<compile_context>
chip_gen: v6e
topology: v6e:2x2x1
jax: 0.10.0
libtpu: 0.0.40
codegen_flags: <defaults>
</compile_context>

<pallas_src>
import math

import jax
import jax.numpy as jnp
from jax.experimental import pallas as pl
from jax.experimental.pallas import tpu as pltpu


EPS = 1e-5  # matches torch.nn.LayerNorm default


def _patch_merging_kernel(x_ref, w_ref, wsum_ref, bias_ref, o_ref):
    # x_ref:    (th, 2, W2, 2C)   parity 0 -> [x0|x2], parity 1 -> [x1|x3]
    # w_ref:    (2, 2C, C2p)      gamma-folded, row-permuted, column-padded weight
    # wsum_ref: (1, C2p)  f32     column sums of the folded (padded) weight
    # bias_ref: (1, C2p)  f32     beta @ w^T (padded)
    # o_ref:    (th*W2, C2p)
    th, _, w2, c2 = x_ref.shape
    n = th * w2
    inv_4c = 1.0 / (2.0 * c2)  # 1 / (4*C)

    # Free leading/slab-dim views; the (th, W2, C2)->(n, C2) merge is
    # relayout-free because th*W2 is kept a multiple of 8 (or the block is the
    # full extent).
    xa = x_ref[:, 0].reshape(n, c2)
    xb = x_ref[:, 1].reshape(n, c2)

    # LayerNorm statistics over the virtual 4C axis, in f32, one parity at a
    # time (avoids holding both f32 casts live -> lower vreg pressure).
    xaf = xa.astype(jnp.float32)
    s1 = jnp.sum(xaf, axis=-1, keepdims=True)
    s2 = jnp.sum(xaf * xaf, axis=-1, keepdims=True)
    xbf = xb.astype(jnp.float32)
    s1 = s1 + jnp.sum(xbf, axis=-1, keepdims=True)
    s2 = s2 + jnp.sum(xbf * xbf, axis=-1, keepdims=True)
    mean = s1 * inv_4c
    # One-pass variance (E[x^2]-E[x]^2, clamped) in f32; marginally less robust
    # than torch's two-pass form only when |mean| >> std.
    var = jnp.maximum(s2 * inv_4c - mean * mean, 0.0)
    inv = jax.lax.rsqrt(var + EPS)

    # Linear(4C -> 2Cp) on the MXU fed with raw tiles (gamma folded into w);
    # LayerNorm shift/scale applied afterwards on the narrow accumulator:
    #   y = ((x - mean) * inv) @ W' + b' = inv * (x @ W' - mean*colsum(W')) + b'
    # Kept as two K=2C dots; fusing into one K=4C dot only pays off when the
    # kernel is MXU-bound (it is HBM-bound for real Swin shapes).
    wdt = w_ref.dtype
    acc = jnp.dot(xa.astype(wdt), w_ref[0], preferred_element_type=jnp.float32)
    acc = acc + jnp.dot(xb.astype(wdt), w_ref[1], preferred_element_type=jnp.float32)
    y = (acc - mean * wsum_ref[...]) * inv + bias_ref[...]

    # Tail grid step: rows past B*H/2 carry garbage (possible transient
    # inf/nan) but their stores are dropped by the partial output block.
    o_ref[...] = y.astype(o_ref.dtype)


def _vmem_caps():
    """Generation-aware (VMEM budget for tiles, requested vmem_limit_bytes)."""
    try:
        info = pltpu.get_tpu_info()
        cap = int(getattr(info, "vmem_capacity_bytes", 128 << 20))
    except Exception:  # conservative fallback
        cap = 64 << 20
    if cap <= (64 << 20):          # v7x-class: 64 MiB per TensorCore
        return 36 << 20, 48 << 20
    return 72 << 20, 96 << 20      # v5e / v6e: 128 MiB


def _pick_rows_block(bh2, w2, c2, c2p, itemsize, budget):
    """Pick the block size along the B*(H/2) axis."""
    in_b = 2 * w2 * c2 * itemsize * 2        # input block, double-buffered
    out_b = w2 * c2p * itemsize * 2          # output block, double-buffered
    tmp_b = w2 * (2 * c2 + 2 * c2p) * 4      # f32 casts + accumulator + epilogue
    per_th = in_b + out_b + tmp_b
    target_rows = 8192                       # merged patches per grid step
    th = min(bh2,
             max(1, target_rows // max(w2, 1)),
             max(1, budget // max(per_th, 1)))
    th = max(th, 1)
    # Keep >= 2 grid steps, with an even count, so the "parallel" axis can be
    # balanced across v7x's two TensorCores.
    if bh2 > 1 and pl.cdiv(bh2, th) < 2:
        th = pl.cdiv(bh2, 2)
    steps = pl.cdiv(bh2, th)
    if steps > 1 and steps % 2 == 1:
        th = pl.cdiv(bh2, steps + 1)
        steps = pl.cdiv(bh2, th)
    # Keep the merged (th*W2) output row block sublane-aligned when tiling.
    if steps > 1 and (th * w2) % 8 != 0:
        g = 8 // math.gcd(8, w2)
        th_al = (th // g) * g
        th = th_al if th_al >= g else min(bh2, g)
        if pl.cdiv(bh2, th) == 1 and th != bh2:
            th = bh2  # single full-extent block satisfies the layout rule
    return th


def patch_merging(x, gamma, beta, w_t, input_resolution, mxu_bf16=False):
    """x: (B, H*W, C) -> (B, H/2*W/2, 2*C). Matches PatchMerging.forward.

    w_t is nn.Linear(4C, 2C, bias=False).weight transposed, shape (4C, 2C).
    mxu_bf16=True feeds the MXU bf16 activations/weights even for f32 inputs
    (v5e MXU-rate tradeoff); accumulation stays f32.
    """
    H, W = input_resolution
    B, L, C = x.shape
    assert L == H * W, "input feature has wrong size"
    assert H % 2 == 0 and W % 2 == 0, f"x size ({H}*{W}) are not even."

    H2, W2 = H // 2, W // 2
    C2, C4 = 2 * C, 4 * C
    C2p = ((C2 + 127) // 128) * 128          # lane-dense output feature dim
    BH2 = B * H2
    R = BH2 * W2                             # number of merged patches

    # Free (contiguous, no-copy) relabeling of the input:
    #   (B, H, W, C) -> (B*H/2, h-parity, W/2, w-parity*C + c)
    xr = x.reshape(BH2, 2, W2, C2)

    # ---- Fold LayerNorm affine into the reduction weight (wrapper-side, tiny).
    wt_f32 = w_t.astype(jnp.float32)                         # (4C, 2C)
    wp = gamma.astype(jnp.float32).reshape(C4, 1) * wt_f32   # gamma-folded
    bias = (beta.astype(jnp.float32) @ wt_f32).reshape(1, C2)
    wsum = jnp.sum(wp, axis=0).reshape(1, C2)
    # Torch feature order is [x0|x1|x2|x3]; the kernel sees [x0|x2] (even-H
    # parity) and [x1|x3] (odd-H parity) -> permute weight rows, not the data.
    wa = jnp.concatenate([wp[0:C], wp[2 * C:3 * C]], axis=0)      # rows for [x0|x2]
    wb = jnp.concatenate([wp[C:2 * C], wp[3 * C:4 * C]], axis=0)  # rows for [x1|x3]
    if C2p != C2:  # pad columns so the output store is lane-dense (full vst)
        pad = ((0, 0), (0, C2p - C2))
        wa, wb = jnp.pad(wa, pad), jnp.pad(wb, pad)
        wsum, bias = jnp.pad(wsum, pad), jnp.pad(bias, pad)
    mxu_dtype = jnp.bfloat16 if (x.dtype == jnp.bfloat16 or mxu_bf16) else jnp.float32
    wab = jnp.stack([wa, wb]).astype(mxu_dtype)                   # (2, 2C, C2p)

    itemsize = jnp.dtype(x.dtype).itemsize
    budget, vmem_limit = _vmem_caps()
    th = _pick_rows_block(BH2, W2, C2, C2p, itemsize, budget)
    grid = (pl.cdiv(BH2, th),)

    cost = pl.CostEstimate(
        flops=2 * R * C4 * C2p,
        transcendentals=R,  # one rsqrt per merged patch
        bytes_accessed=R * (C4 + C2p) * itemsize
        + wab.size * jnp.dtype(mxu_dtype).itemsize,
    )

    out = pl.pallas_call(
        _patch_merging_kernel,
        out_shape=jax.ShapeDtypeStruct((BH2 * W2, C2p), x.dtype),
        grid_spec=pltpu.PrefetchScalarGridSpec(
            num_scalar_prefetch=0,
            grid=grid,
            in_specs=[
                # one contiguous window per step; parity sliced in-kernel
                pl.BlockSpec((th, 2, W2, C2), lambda i: (i, 0, 0, 0)),
                pl.BlockSpec((2, C2, C2p), lambda i: (0, 0, 0)),
                pl.BlockSpec((1, C2p), lambda i: (0, 0)),
                pl.BlockSpec((1, C2p), lambda i: (0, 0)),
            ],
            out_specs=pl.BlockSpec((th * W2, C2p), lambda i: (i, 0)),
        ),
        compiler_params=pltpu.CompilerParams(
            # TODO(synk): evaluate pltpu.CORE_PARALLEL / pl.core_map on v7x for
            # explicit 2-TC splitting of the row axis.
            dimension_semantics=("parallel",),
            vmem_limit_bytes=vmem_limit,
        ),
        cost_estimate=cost,
    )(xr, wab, wsum, bias)

    # Free reshape back to (B, H/2*W/2, C2p); slice off the lane padding.
    out = out.reshape(B, H2 * W2, C2p)
    if C2p != C2:
        out = out[..., :C2]  # in production the consumer would absorb this slice
    return out


def reference(x, gamma, beta, w_t, input_resolution):
    """Pure-JAX reference mirroring the PyTorch forward exactly."""
    H, W = input_resolution
    B, L, C = x.shape
    xv = x.reshape(B, H, W, C)
    x0 = xv[:, 0::2, 0::2, :]
    x1 = xv[:, 1::2, 0::2, :]
    x2 = xv[:, 0::2, 1::2, :]
    x3 = xv[:, 1::2, 1::2, :]
    m = jnp.concatenate([x0, x1, x2, x3], axis=-1).reshape(B, -1, 4 * C)
    mean = jnp.mean(m, axis=-1, keepdims=True)
    var = jnp.mean((m - mean) ** 2, axis=-1, keepdims=True)
    mn = (m - mean) / jnp.sqrt(var + EPS) * gamma + beta
    return mn @ w_t


if __name__ == "__main__":
    # Module config: input_resolution=(16, 16), dim=4  ->  x: (B, 256, 4)
    B, H, W, dim = 2, 16, 16, 4
    key = jax.random.PRNGKey(0)
    kx, kw, kg, kb = jax.random.split(key, 4)

    x = jax.random.normal(kx, (B, H * W, dim), dtype=jnp.float32)

    # Non-trivial LayerNorm affine (exercises gamma/beta folding);
    # nn.Linear(4*dim, 2*dim, bias=False) weight used transposed (x @ w^T).
    gamma = 1.0 + 0.1 * jax.random.normal(kg, (4 * dim,), dtype=jnp.float32)
    beta = 0.1 * jax.random.normal(kb, (4 * dim,), dtype=jnp.float32)
    w = jax.random.normal(kw, (2 * dim, 4 * dim), dtype=jnp.float32) * 0.05
    w_t = w.T  # (4*dim, 2*dim)

    out = patch_merging(x, gamma, beta, w_t, (H, W))
    out = jax.block_until_ready(out)

    ref = reference(x, gamma, beta, w_t, (H, W))
    assert out.shape == (B, (H // 2) * (W // 2), 2 * dim), out.shape
    assert jnp.allclose(out, ref, atol=1e-4, rtol=1e-4), (
        "mismatch vs reference: max abs diff "
        f"{float(jnp.max(jnp.abs(out - ref)))}"
    )

    print("KERNEL_OK")
</pallas_src>

<mosaic_0001>
module attributes {stable_mosaic.version = 11 : i64} {
  func.func @_patch_merging_kernel(%arg0: i32, %arg1: memref<8x2x8x8xf32, #tpu.memory_space<vmem>>, %arg2: memref<2x8x128xf32, #tpu.memory_space<vmem>>, %arg3: memref<1x128xf32, #tpu.memory_space<vmem>>, %arg4: memref<1x128xf32, #tpu.memory_space<vmem>>, %arg5: memref<64x128xf32, #tpu.memory_space<vmem>>) attributes {dimension_semantics = [#tpu.dimension_semantics<parallel>], iteration_bounds = array<i64: 2>, scalar_prefetch = 0 : i64, scratch_operands = 0 : i64, tpu.core_type = #tpu.core_type<tc>, window_params = [{transform_indices = @transform_0, window_bounds = array<i64: 8, 2, 8, 8>}, {pipeline_mode = #tpu.pipeline_mode<synchronous>, transform_indices = @transform_1, window_bounds = array<i64: 2, 8, 128>}, {pipeline_mode = #tpu.pipeline_mode<synchronous>, transform_indices = @transform_2, window_bounds = array<i64: 1, 128>}, {pipeline_mode = #tpu.pipeline_mode<synchronous>, transform_indices = @transform_3, window_bounds = array<i64: 1, 128>}, {transform_indices = @transform_4, window_bounds = array<i64: 64, 128>}]} {
    %c0 = arith.constant 0 : index
    %c0_0 = arith.constant 0 : index
    %c0_1 = arith.constant 0 : index
    %c0_2 = arith.constant 0 : index
    %0 = vector.load %arg1[%c0, %c0_0, %c0_1, %c0_2] : memref<8x2x8x8xf32, #tpu.memory_space<vmem>>, vector<8x1x8x8xf32>
    %1 = vector.shape_cast %0 : vector<8x1x8x8xf32> to vector<8x8x8xf32>
    %2 = vector.shape_cast %1 : vector<8x8x8xf32> to vector<64x8xf32>
    %c0_3 = arith.constant 0 : index
    %c1 = arith.constant 1 : index
    %c0_4 = arith.constant 0 : index
    %c0_5 = arith.constant 0 : index
    %3 = vector.load %arg1[%c0_3, %c1, %c0_4, %c0_5] : memref<8x2x8x8xf32, #tpu.memory_space<vmem>>, vector<8x1x8x8xf32>
    %4 = vector.shape_cast %3 : vector<8x1x8x8xf32> to vector<8x8x8xf32>
    %5 = vector.shape_cast %4 : vector<8x8x8xf32> to vector<64x8xf32>
    %cst = arith.constant dense<0.000000e+00> : vector<64xf32>
    %6 = vector.multi_reduction <add>, %2, %cst [1] : vector<64x8xf32> to vector<64xf32>
    %7 = vector.shape_cast %6 : vector<64xf32> to vector<64x1xf32>
    %8 = arith.mulf %2, %2 : vector<64x8xf32>
    %cst_6 = arith.constant dense<0.000000e+00> : vector<64xf32>
    %9 = vector.multi_reduction <add>, %8, %cst_6 [1] : vector<64x8xf32> to vector<64xf32>
    %10 = vector.shape_cast %9 : vector<64xf32> to vector<64x1xf32>
    %cst_7 = arith.constant dense<0.000000e+00> : vector<64xf32>
    %11 = vector.multi_reduction <add>, %5, %cst_7 [1] : vector<64x8xf32> to vector<64xf32>
    %12 = vector.shape_cast %11 : vector<64xf32> to vector<64x1xf32>
    %13 = arith.addf %7, %12 : vector<64x1xf32>
    %14 = arith.mulf %5, %5 : vector<64x8xf32>
    %cst_8 = arith.constant dense<0.000000e+00> : vector<64xf32>
    %15 = vector.multi_reduction <add>, %14, %cst_8 [1] : vector<64x8xf32> to vector<64xf32>
    %16 = vector.shape_cast %15 : vector<64xf32> to vector<64x1xf32>
    %17 = arith.addf %10, %16 : vector<64x1xf32>
    %cst_9 = arith.constant 6.250000e-02 : f32
    %18 = vector.broadcast %cst_9 : f32 to vector<64x1xf32>
    %19 = arith.mulf %13, %18 : vector<64x1xf32>
    %cst_10 = arith.constant 6.250000e-02 : f32
    %20 = vector.broadcast %cst_10 : f32 to vector<64x1xf32>
    %21 = arith.mulf %17, %20 : vector<64x1xf32>
    %22 = arith.mulf %19, %19 : vector<64x1xf32>
    %23 = arith.subf %21, %22 : vector<64x1xf32>
    %cst_11 = arith.constant 0.000000e+00 : f32
    %24 = vector.broadcast %cst_11 : f32 to vector<64x1xf32>
    %25 = arith.maximumf %23, %24 : vector<64x1xf32>
    %cst_12 = arith.constant 9.99999974E-6 : f32
    %26 = vector.broadcast %cst_12 : f32 to vector<64x1xf32>
    %27 = arith.addf %25, %26 : vector<64x1xf32>
    %28 = math.rsqrt %27 : vector<64x1xf32>
    %c0_13 = arith.constant 0 : index
    %c0_14 = arith.constant 0 : index
    %c0_15 = arith.constant 0 : index
    %29 = vector.load %arg2[%c0_13, %c0_14, %c0_15] : memref<2x8x128xf32, #tpu.memory_space<vmem>>, vector<1x8x128xf32>
    %30 = vector.shape_cast %29 : vector<1x8x128xf32> to vector<8x128xf32>
    %cst_16 = arith.constant dense<0.000000e+00> : vector<64x128xf32>
    %31 = tpu.matmul %2, %30, %cst_16 {dimension_numbers = #tpu.dot_dimension_numbers<[1], [0], [0], [1], [0, 0, 1, 1], [], []>} : vector<64x8xf32>, vector<8x128xf32>, vector<64x128xf32> -> vector<64x128xf32>
    %c1_17 = arith.constant 1 : index
    %c0_18 = arith.constant 0 : index
    %c0_19 = arith.constant 0 : index
    %32 = vector.load %arg2[%c1_17, %c0_18, %c0_19] : memref<2x8x128xf32, #tpu.memory_space<vmem>>, vector<1x8x128xf32>
    %33 = vector.shape_cast %32 : vector<1x8x128xf32> to vector<8x128xf32>
    %cst_20 = arith.constant dense<0.000000e+00> : vector<64x128xf32>
    %34 = tpu.matmul %5, %33, %cst_20 {dimension_numbers = #tpu.dot_dimension_numbers<[1], [0], [0], [1], [0, 0, 1, 1], [], []>} : vector<64x8xf32>, vector<8x128xf32>, vector<64x128xf32> -> vector<64x128xf32>
    %35 = arith.addf %31, %34 : vector<64x128xf32>
    %c0_21 = arith.constant 0 : index
    %c0_22 = arith.constant 0 : index
    %36 = vector.load %arg3[%c0_21, %c0_22] : memref<1x128xf32, #tpu.memory_space<vmem>>, vector<1x128xf32>
    %37 = vector.broadcast %19 : vector<64x1xf32> to vector<64x128xf32>
    %38 = vector.broadcast %36 : vector<1x128xf32> to vector<64x128xf32>
    %39 = arith.mulf %37, %38 : vector<64x128xf32>
    %40 = arith.subf %35, %39 : vector<64x128xf32>
    %41 = vector.broadcast %28 : vector<64x1xf32> to vector<64x128xf32>
    %42 = arith.mulf %40, %41 : vector<64x128xf32>
    %c0_23 = arith.constant 0 : index
    %c0_24 = arith.constant 0 : index
    %43 = vector.load %arg4[%c0_23, %c0_24] : memref<1x128xf32, #tpu.memory_space<vmem>>, vector<1x128xf32>
    %44 = vector.broadcast %43 : vector<1x128xf32> to vector<64x128xf32>
    %45 = arith.addf %42, %44 : vector<64x128xf32>
    %c0_25 = arith.constant 0 : index
    %c0_26 = arith.constant 0 : index
    %46 = vector.load %arg5[%c0_25, %c0_26] : memref<64x128xf32, #tpu.memory_space<vmem>>, vector<64x128xf32>
    tpu.vector_store %arg5[%c0_25, %c0_26], %45 {strides = array<i32>} : memref<64x128xf32, #tpu.memory_space<vmem>>, vector<64x128xf32>,
    return
  }
  func.func @transform_0(%arg0: i32) -> (i32, i32, i32, i32) {
    %c0_i32 = arith.constant 0 : i32
    %c0_i32_0 = arith.constant 0 : i32
    %c0_i32_1 = arith.constant 0 : i32
    %c0_i32_2 = arith.constant 0 : i32
    return %arg0, %c0_i32, %c0_i32_0, %c0_i32_1 : i32, i32, i32, i32
  }
  func.func @transform_1(%arg0: i32) -> (i32, i32, i32) {
    %c0_i32 = arith.constant 0 : i32
    %c0_i32_0 = arith.constant 0 : i32
    %c0_i32_1 = arith.constant 0 : i32
    %c0_i32_2 = arith.constant 0 : i32
    return %c0_i32, %c0_i32_0, %c0_i32_1 : i32, i32, i32
  }
  func.func @transform_2(%arg0: i32) -> (i32, i32) {
    %c0_i32 = arith.constant 0 : i32
    %c0_i32_0 = arith.constant 0 : i32
    %c0_i32_1 = arith.constant 0 : i32
    return %c0_i32, %c0_i32_0 : i32, i32
  }
  func.func @transform_3(%arg0: i32) -> (i32, i32) {
    %c0_i32 = arith.constant 0 : i32
    %c0_i32_0 = arith.constant 0 : i32
    %c0_i32_1 = arith.constant 0 : i32
    return %c0_i32, %c0_i32_0 : i32, i32
  }
  func.func @transform_4(%arg0: i32) -> (i32, i32) {
    %c0_i32 = arith.constant 0 : i32
    %c0_i32_0 = arith.constant 0 : i32
    return %arg0, %c0_i32 : i32, i32
  }
}

</mosaic_0001>

<llo_original>
// kernel: tpu_custom_call.1
$region0: #{tpu_custom_call.1}
  #allocation0 [shape = 'u32[]', space=smem, size = 0x4, offset = 0x4, fixed_abs, tag = 'smem constant byte address 0x4 - core index']
  #allocation1 [shape = 'u32[144,128]{1,0:T(1,128)}', space=vmem, size = 0x12000, scoped, tag = 'internal scratch']
  %s0 = inlined_call_operand.vmem [shape: f32[16,2,8,8], index: 0, kind: input, shape index: {}]
  %s1 = inlined_call_operand.vmem [shape: f32[2,8,128], index: 1, kind: input, shape index: {}]
  %s2 = inlined_call_operand.vmem [shape: f32[1,128], index: 2, kind: input, shape index: {}]
  %s3 = inlined_call_operand.vmem [shape: f32[1,128], index: 3, kind: input, shape index: {}]
  %s4 = inlined_call_operand.hbm [shape: f32[128,128], index: 4, kind: output, shape index: {}]
  %s5 = sld [smem:[#allocation0]]
  $region49: #{tpu_custom_call.1} parent=0
    _
  %s7 = ssub.s32 1, %s5
  %s8 = scalar_select 0, %s7, %s5
  $region1: #{tpu_custom_call.1} parent=0
    #allocation2 [shape = 'u8[65536]{0}', space=vmem, size = 0x10000, scoped, tag = 'output window, operand 0']
    #allocation3 [shape = 's32[2]{0}', space=sflag, size = 0x8, scoped, tag = 'scoped memory for tpu_custom_call.1']
    %9 = vsyncpa [#allocation3], 0
    %s10 = scalar_lea.sflag [#allocation3], 1
    %11 = vsyncpa %s10, 0
    loop: start=0, step=1, limit=4
    $region2: #{tpu_custom_call.1} parent=1 // loop_pre_header
      _
    $region3: #{tpu_custom_call.1} parent=1 // loop_header
      %s13 = sphi 0, %s17
      %p14 = scmp.ge.s32.totalorder %s13, 4
      %s23 = sphi 0, %s25
      %s26 = sphi 0, %s23
      %s27 = sphi 0, %s26
      %s43 = sphi 0, %s27
      %s47 = sphi 0, %s47
      %s49 = sphi 0, %s47
      %s50 = sphi 0, %s49
      %s64 = sphi 0, %s50
      %s68 = sphi 0, %s68
      %s70 = sphi 0, %s68
      %s71 = sphi 0, %s70
      %s85 = sphi 0, %s71
      %s89 = sphi 0, %s89
      %s91 = sphi 0, %s89
      %s92 = sphi 0, %s91
      %s106 = sphi 0, %s92
      %s112 = sphi 0, %s114
      %s115 = sphi 0, %s112
      %s116 = sphi 0, %s115
      %s132 = sphi 0, %s116
    $region4: #{tpu_custom_call.1} parent=1 // loop_header_branch
      %16 = sbr.rel (%p14) target = $region8
    $region5: #{tpu_custom_call.1} parent=1 // loop_body
      %s18 = ssub.s32 %s13, 1
      %s19 = ssub.s32 %s13, 2
      %s20 = sadd.s32 %s13, 1
      %s21 = ssub.s32 %s13, %s20
      %p22 = scmp.eq.s32.totalorder %s21, 0
      %s24 = sadd.s32 %s23, 1
      %s25 = scalar_select %p22, %s23, %s24
      %p28 = pneg %p22
      %p29 = scmp.eq.s32.totalorder %s13, 1
      %p30 = por %p28, %p29
      %p31 = scmp.ne.s32.totalorder %s23, %s26
      %p32 = scmp.eq.s32.totalorder %s13, 0
      %p33 = por %p31, %p32
      %p34 = scmp.ne.s32.totalorder %s23, %s26
      %p35 = scmp.eq.s32.totalorder %s18, 1
      %p36 = por %p34, %p35
      %p37 = scmp.ne.s32.totalorder %s26, %s27
      %p38 = scmp.eq.s32.totalorder %s18, 0
      %p39 = por %p37, %p38
      %p40 = scmp.ne.s32.totalorder %s26, %s27
      %p41 = scmp.eq.s32.totalorder %s19, 1
      %p42 = por %p40, %p41
      %p44 = scmp.ne.s32.totalorder %s27, %s43
      %p45 = scmp.eq.s32.totalorder %s19, 0
      %p46 = por %p44, %p45
      %s48 = sadd.s32 %s47, 1
      %p51 = scmp.eq.s32.totalorder %s13, 1
      %p52 = scmp.ne.s32.totalorder %s47, %s49
      %p53 = scmp.eq.s32.totalorder %s13, 0
      %p54 = por %p52, %p53
      %p55 = scmp.ne.s32.totalorder %s47, %s49
      %p56 = scmp.eq.s32.totalorder %s18, 1
      %p57 = por %p55, %p56
      %p58 = scmp.ne.s32.totalorder %s49, %s50
      %p59 = scmp.eq.s32.totalorder %s18, 0
      %p60 = por %p58, %p59
      %p61 = scmp.ne.s32.totalorder %s49, %s50
      %p62 = scmp.eq.s32.totalorder %s19, 1
      %p63 = por %p61, %p62
      %p65 = scmp.ne.s32.totalorder %s50, %s64
      %p66 = scmp.eq.s32.totalorder %s19, 0
      %p67 = por %p65, %p66
      %s69 = sadd.s32 %s68, 1
      %p72 = scmp.eq.s32.totalorder %s13, 1
      %p73 = scmp.ne.s32.totalorder %s68, %s70
      %p74 = scmp.eq.s32.totalorder %s13, 0
      %p75 = por %p73, %p74
      %p76 = scmp.ne.s32.totalorder %s68, %s70
      %p77 = scmp.eq.s32.totalorder %s18, 1
      %p78 = por %p76, %p77
      %p79 = scmp.ne.s32.totalorder %s70, %s71
      %p80 = scmp.eq.s32.totalorder %s18, 0
      %p81 = por %p79, %p80
      %p82 = scmp.ne.s32.totalorder %s70, %s71
      %p83 = scmp.eq.s32.totalorder %s19, 1
      %p84 = por %p82, %p83
      %p86 = scmp.ne.s32.totalorder %s71, %s85
      %p87 = scmp.eq.s32.totalorder %s19, 0
      %p88 = por %p86, %p87
      %s90 = sadd.s32 %s89, 1
      %p93 = scmp.eq.s32.totalorder %s13, 1
      %p94 = scmp.ne.s32.totalorder %s89, %s91
      %p95 = scmp.eq.s32.totalorder %s13, 0
      %p96 = por %p94, %p95
      %p97 = scmp.ne.s32.totalorder %s89, %s91
      %p98 = scmp.eq.s32.totalorder %s18, 1
      %p99 = por %p97, %p98
      %p100 = scmp.ne.s32.totalorder %s91, %s92
      %p101 = scmp.eq.s32.totalorder %s18, 0
      %p102 = por %p100, %p101
      %p103 = scmp.ne.s32.totalorder %s91, %s92
      %p104 = scmp.eq.s32.totalorder %s19, 1
      %p105 = por %p103, %p104
      %p107 = scmp.ne.s32.totalorder %s92, %s106
      %p108 = scmp.eq.s32.totalorder %s19, 0
      %p109 = por %p107, %p108
      %s110 = ssub.s32 %s13, %s20
      %p111 = scmp.eq.s32.totalorder %s110, 0
      %s113 = sadd.s32 %s112, 1
      %s114 = scalar_select %p111, %s112, %s113
      %p117 = pneg %p111
      %p118 = scmp.eq.s32.totalorder %s13, 1
      %p119 = por %p117, %p118
      %p120 = scmp.ne.s32.totalorder %s112, %s115
      %p121 = scmp.eq.s32.totalorder %s13, 0
      %p122 = por %p120, %p121
      %p123 = scmp.ne.s32.totalorder %s112, %s115
      %p124 = scmp.eq.s32.totalorder %s18, 1
      %p125 = por %p123, %p124
      %p126 = scmp.ne.s32.totalorder %s115, %s116
      %p127 = scmp.eq.s32.totalorder %s18, 0
      %p128 = por %p126, %p127
      %p129 = scmp.ne.s32.totalorder %s115, %s116
      %p130 = scmp.eq.s32.totalorder %s19, 1
      %p131 = por %p129, %p130
      %p133 = scmp.ne.s32.totalorder %s116, %s132
      %p134 = scmp.eq.s32.totalorder %s19, 0
      %p135 = por %p133, %p134
      %p136 = scmp.le.s32.totalorder 1, %s13
      %p137 = scmp.lt.s32.totalorder %s13, 3
      %p138 = pnand %p136, %p137
      %p139 = pneg %p138
      // Predicated region
      $region9: #{tpu_custom_call.1} parent=5 // pred_check
        _
      $region10: #{tpu_custom_call.1} parent=5 // pred_check_branch
        %141 = sbr.rel (%p138) target = $region12
      $region11: #{tpu_custom_call.1} parent=5 // pred_region
        %s142 = ssub.s32 %s13, 1
        // Predicated region
        $region13: #{tpu_custom_call.1} parent=11 // pred_check
          %p143 = pneg %p60
        $region14: #{tpu_custom_call.1} parent=11 // pred_check_branch
          %145 = sbr.rel (%p143) target = $region16
        $region15: #{tpu_custom_call.1} parent=11 // pred_region
          _
        $region16: #{tpu_custom_call.1} parent=11 // pred_fallthru
          _
        // Predicated region
        $region17: #{tpu_custom_call.1} parent=11 // pred_check
          %p146 = pneg %p81
        $region18: #{tpu_custom_call.1} parent=11 // pred_check_branch
          %148 = sbr.rel (%p146) target = $region20
        $region19: #{tpu_custom_call.1} parent=11 // pred_region
          _
        $region20: #{tpu_custom_call.1} parent=11 // pred_fallthru
          _
        // Predicated region
        $region21: #{tpu_custom_call.1} parent=11 // pred_check
          %p149 = pneg %p102
        $region22: #{tpu_custom_call.1} parent=11 // pred_check_branch
          %151 = sbr.rel (%p149) target = $region24
        $region23: #{tpu_custom_call.1} parent=11 // pred_region
          _
        $region24: #{tpu_custom_call.1} parent=11 // pred_fallthru
          _
      $region12: #{tpu_custom_call.1} parent=5 // pred_fallthru
        _
      %p152 = scmp.lt.s32.totalorder %s13, 2
      // Predicated region
      $region25: #{tpu_custom_call.1} parent=5 // pred_check
        %p153 = pneg %p152
      $region26: #{tpu_custom_call.1} parent=5 // pred_check_branch
        %155 = sbr.rel (%p153) target = $region28
      $region27: #{tpu_custom_call.1} parent=5 // pred_region
        // Predicated region
        $region29: #{tpu_custom_call.1} parent=27 // pred_check
          %p156 = pneg %p33
        $region30: #{tpu_custom_call.1} parent=27 // pred_check_branch
          %158 = sbr.rel (%p156) target = $region32
        $region31: #{tpu_custom_call.1} parent=27 // pred_region
          %s159 = smul.u32 8, %s13
          %p160 = scmp.lt.s32.totalorder %s159, 15
          %s161 = scalar_select %p160, %s159, 15
          %s162 = smul.addr %s161, 2
          %s163 = smul.addr %s162, 8
          %s164 = scalar_lea.vmem %s0, %s163
          %s165 = smul.u32 8, %s13
        $region32: #{tpu_custom_call.1} parent=27 // pred_fallthru
          _
      $region28: #{tpu_custom_call.1} parent=5 // pred_fallthru
        _
      %p166 = scmp.le.s32.totalorder 1, %s13
      %p167 = scmp.lt.s32.totalorder %s13, 3
      %p168 = pnand %p166, %p167
      %p169 = pneg %p168
      // Predicated region
      $region33: #{tpu_custom_call.1} parent=5 // pred_check
        _
      $region34: #{tpu_custom_call.1} parent=5 // pred_check_branch
        %171 = sbr.rel (%p168) target = $region36
      $region35: #{tpu_custom_call.1} parent=5 // pred_region
        %s172 = ssub.s32 %s13, 1
        %s173 = smul.u32 8, %s18
        %p174 = scmp.lt.s32.totalorder %s173, 15
        %s175 = scalar_select %p174, %s173, 15
        %s176 = smul.addr %s175, 2
        %s177 = smul.addr %s176, 8
        %s178 = scalar_lea.vmem %s0, %s177
        %p179 = pneg %p39
        %p180 = pneg %p36
        %p181 = pneg %p60
        %p182 = pneg %p57
        %p183 = pneg %p81
        %p184 = pneg %p78
        %p185 = pneg %p102
        %p186 = pneg %p99
        %p187 = pneg %p128
        %p188 = pneg %p125
        %s189 = sand.u32 %s115, 1
        %s190 = scalar_lea.sflag [#allocation3], %s189
        %s191 = sand.u32 %s115, 1
        %s192 = smul.addr %s191, 64
        %s193 = scalar_lea.vmem [#allocation2], %s192
        %s194 = smul.u32 8, %s18
        %p195 = scmp.lt.s32.totalorder %s194, 15
        %s196 = scalar_select %p195, %s194, 15
        %s197 = smul.addr %s196, 2
        %s198 = smul.addr %s197, 8
        %s199 = scalar_lea.vmem %s0, %s198
        %s200 = smul.u32 8, %s18
        %s201 = smul.u32 8, %s18
        %v202 = vld [vmem:[%s199] sm:$0xff]
        %v203 = vld [vmem:[%s199 + $0x10] sm:$0xff]
        %v204 = vld [vmem:[%s199 + $0x20] sm:$0xff]
        %v205 = vld [vmem:[%s199 + $0x30] sm:$0xff]
        %v206 = vld [vmem:[%s199 + $0x40] sm:$0xff]
        %v207 = vld [vmem:[%s199 + $0x50] sm:$0xff]
        %v208 = vld [vmem:[%s199 + $0x60] sm:$0xff]
        %v209 = vld [vmem:[%s199 + $0x70] sm:$0xff]
        %s210 = scalar_lea.vmem %s199, 8
        %v211 = vld [vmem:[%s210] sm:$0xff]
        %v212 = vld [vmem:[%s210 + $0x10] sm:$0xff]
        %v213 = vld [vmem:[%s210 + $0x20] sm:$0xff]
        %v214 = vld [vmem:[%s210 + $0x30] sm:$0xff]
        %v215 = vld [vmem:[%s210 + $0x40] sm:$0xff]
        %v216 = vld [vmem:[%s210 + $0x50] sm:$0xff]
        %v217 = vld [vmem:[%s210 + $0x60] sm:$0xff]
        %v218 = vld [vmem:[%s210 + $0x70] sm:$0xff]
        %vm219 = vcmask 64512
        %v220 = vsel %vm219, %v202, 0.0
        %221 = vadd.xlane.f32.xlu0 %v220
        %v222 = vpop.xlane.xlu0 %221
        %v223 = vsel %vm219, %v203, 0.0
        %224 = vadd.xlane.f32.xlu0 %v223
        %v225 = vpop.xlane.xlu0 %224
        %v226 = vsel %vm219, %v204, 0.0
        %227 = vadd.xlane.f32.xlu0 %v226
        %v228 = vpop.xlane.xlu0 %227
        %v229 = vsel %vm219, %v205, 0.0
        %230 = vadd.xlane.f32.xlu0 %v229
        %v231 = vpop.xlane.xlu0 %230
        %v232 = vsel %vm219, %v206, 0.0
        %233 = vadd.xlane.f32.xlu0 %v232
        %v234 = vpop.xlane.xlu0 %233
        %v235 = vsel %vm219, %v207, 0.0
        %236 = vadd.xlane.f32.xlu0 %v235
        %v237 = vpop.xlane.xlu0 %236
        %v238 = vsel %vm219, %v208, 0.0
        %239 = vadd.xlane.f32.xlu0 %v238
        %v240 = vpop.xlane.xlu0 %239
        %v241 = vsel %vm219, %v209, 0.0
        %242 = vadd.xlane.f32.xlu0 %v241
        %v243 = vpop.xlane.xlu0 %242
        %v244 = vmul.f32 %v202, %v202
        %v245 = vmul.f32 %v203, %v203
        %v246 = vmul.f32 %v204, %v204
        %v247 = vmul.f32 %v205, %v205
        %v248 = vmul.f32 %v206, %v206
        %v249 = vmul.f32 %v207, %v207
        %v250 = vmul.f32 %v208, %v208
        %v251 = vmul.f32 %v209, %v209
        %v252 = vsel %vm219, %v244, 0.0
        %253 = vadd.xlane.f32.xlu0 %v252
        %v254 = vpop.xlane.xlu0 %253
        %v255 = vsel %vm219, %v245, 0.0
        %256 = vadd.xlane.f32.xlu0 %v255
        %v257 = vpop.xlane.xlu0 %256
        %v258 = vsel %vm219, %v246, 0.0
        %259 = vadd.xlane.f32.xlu0 %v258
        %v260 = vpop.xlane.xlu0 %259
        %v261 = vsel %vm219, %v247, 0.0
        %262 = vadd.xlane.f32.xlu0 %v261
        %v263 = vpop.xlane.xlu0 %262
        %v264 = vsel %vm219, %v248, 0.0
        %265 = vadd.xlane.f32.xlu0 %v264
        %v266 = vpop.xlane.xlu0 %265
        %v267 = vsel %vm219, %v249, 0.0
        %268 = vadd.xlane.f32.xlu0 %v267
        %v269 = vpop.xlane.xlu0 %268
        %v270 = vsel %vm219, %v250, 0.0
        %271 = vadd.xlane.f32.xlu0 %v270
        %v272 = vpop.xlane.xlu0 %271
        %v273 = vsel %vm219, %v251, 0.0
        %274 = vadd.xlane.f32.xlu0 %v273
        %v275 = vpop.xlane.xlu0 %274
        %v276 = vsel %vm219, %v211, 0.0
        %277 = vadd.xlane.f32.xlu0 %v276
        %v278 = vpop.xlane.xlu0 %277
        %v279 = vsel %vm219, %v212, 0.0
        %280 = vadd.xlane.f32.xlu0 %v279
        %v281 = vpop.xlane.xlu0 %280
        %v282 = vsel %vm219, %v213, 0.0
        %283 = vadd.xlane.f32.xlu0 %v282
        %v284 = vpop.xlane.xlu0 %283
        %v285 = vsel %vm219, %v214, 0.0
        %286 = vadd.xlane.f32.xlu0 %v285
        %v287 = vpop.xlane.xlu0 %286
        %v288 = vsel %vm219, %v215, 0.0
        %289 = vadd.xlane.f32.xlu0 %v288
        %v290 = vpop.xlane.xlu0 %289
        %v291 = vsel %vm219, %v216, 0.0
        %292 = vadd.xlane.f32.xlu0 %v291
        %v293 = vpop.xlane.xlu0 %292
        %v294 = vsel %vm219, %v217, 0.0
        %295 = vadd.xlane.f32.xlu0 %v294
        %v296 = vpop.xlane.xlu0 %295
        %v297 = vsel %vm219, %v218, 0.0
        %298 = vadd.xlane.f32.xlu0 %v297
        %v299 = vpop.xlane.xlu0 %298
        %v300 = vadd.f32 %v222, %v278
        %v301 = vadd.f32 %v225, %v281
        %v302 = vadd.f32 %v228, %v284
        %v303 = vadd.f32 %v231, %v287
        %v304 = vadd.f32 %v234, %v290
        %v305 = vadd.f32 %v237, %v293
        %v306 = vadd.f32 %v240, %v296
        %v307 = vadd.f32 %v243, %v299
        %v308 = vmul.f32 %v211, %v211
        %v309 = vmul.f32 %v212, %v212
        %v310 = vmul.f32 %v213, %v213
        %v311 = vmul.f32 %v214, %v214
        %v312 = vmul.f32 %v215, %v215
        %v313 = vmul.f32 %v216, %v216
        %v314 = vmul.f32 %v217, %v217
        %v315 = vmul.f32 %v218, %v218
        %v316 = vsel %vm219, %v308, 0.0
        %317 = vadd.xlane.f32.xlu0 %v316
        %v318 = vpop.xlane.xlu0 %317
        %v319 = vsel %vm219, %v309, 0.0
        %320 = vadd.xlane.f32.xlu0 %v319
        %v321 = vpop.xlane.xlu0 %320
        %v322 = vsel %vm219, %v310, 0.0
        %323 = vadd.xlane.f32.xlu0 %v322
        %v324 = vpop.xlane.xlu0 %323
        %v325 = vsel %vm219, %v311, 0.0
        %326 = vadd.xlane.f32.xlu0 %v325
        %v327 = vpop.xlane.xlu0 %326
        %v328 = vsel %vm219, %v312, 0.0
        %329 = vadd.xlane.f32.xlu0 %v328
        %v330 = vpop.xlane.xlu0 %329
        %v331 = vsel %vm219, %v313, 0.0
        %332 = vadd.xlane.f32.xlu0 %v331
        %v333 = vpop.xlane.xlu0 %332
        %v334 = vsel %vm219, %v314, 0.0
        %335 = vadd.xlane.f32.xlu0 %v334
        %v336 = vpop.xlane.xlu0 %335
        %v337 = vsel %vm219, %v315, 0.0
        %338 = vadd.xlane.f32.xlu0 %v337
        %v339 = vpop.xlane.xlu0 %338
        %v340 = vadd.f32 %v254, %v318
        %v341 = vadd.f32 %v257, %v321
        %v342 = vadd.f32 %v260, %v324
        %v343 = vadd.f32 %v263, %v327
        %v344 = vadd.f32 %v266, %v330
        %v345 = vadd.f32 %v269, %v333
        %v346 = vadd.f32 %v272, %v336
        %v347 = vadd.f32 %v275, %v339
        %v348 = vmul.f32 %v300, 0.0625
        %v349 = vmul.f32 %v301, 0.0625
        %v350 = vmul.f32 %v302, 0.0625
        %v351 = vmul.f32 %v303, 0.0625
        %v352 = vmul.f32 %v304, 0.0625
        %v353 = vmul.f32 %v305, 0.0625
        %v354 = vmul.f32 %v306, 0.0625
        %v355 = vmul.f32 %v307, 0.0625
        %v356 = vmul.f32 %v340, 0.0625
        %v357 = vmul.f32 %v341, 0.0625
        %v358 = vmul.f32 %v342, 0.0625
        %v359 = vmul.f32 %v343, 0.0625
        %v360 = vmul.f32 %v344, 0.0625
        %v361 = vmul.f32 %v345, 0.0625
        %v362 = vmul.f32 %v346, 0.0625
        %v363 = vmul.f32 %v347, 0.0625
        %v364 = vmul.f32 %v348, %v348
        %v365 = vmul.f32 %v349, %v349
        %v366 = vmul.f32 %v350, %v350
        %v367 = vmul.f32 %v351, %v351
        %v368 = vmul.f32 %v352, %v352
        %v369 = vmul.f32 %v353, %v353
        %v370 = vmul.f32 %v354, %v354
        %v371 = vmul.f32 %v355, %v355
        %v372 = vsub.f32 %v356, %v364
        %v373 = vsub.f32 %v357, %v365
        %v374 = vsub.f32 %v358, %v366
        %v375 = vsub.f32 %v359, %v367
        %v376 = vsub.f32 %v360, %v368
        %v377 = vsub.f32 %v361, %v369
        %v378 = vsub.f32 %v362, %v370
        %v379 = vsub.f32 %v363, %v371
        %v380 = vmax.f32 %v372, 0.0
        %v381 = vmax.f32 %v373, 0.0
        %v382 = vmax.f32 %v374, 0.0
        %v383 = vmax.f32 %v375, 0.0
        %v384 = vmax.f32 %v376, 0.0
        %v385 = vmax.f32 %v377, 0.0
        %v386 = vmax.f32 %v378, 0.0
        %v387 = vmax.f32 %v379, 0.0
        %v388 = vadd.f32 %v380, 1e-05
        %v389 = vadd.f32 %v381, 1e-05
        %v390 = vadd.f32 %v382, 1e-05
        %v391 = vadd.f32 %v383, 1e-05
        %v392 = vadd.f32 %v384, 1e-05
        %v393 = vadd.f32 %v385, 1e-05
        %v394 = vadd.f32 %v386, 1e-05
        %v395 = vadd.f32 %v387, 1e-05
        %v396 = vrsqrt.pop %v388
        %v397 = vrsqrt.pop %v389
        %v398 = vrsqrt.pop %v390
        %v399 = vrsqrt.pop %v391
        %v400 = vrsqrt.pop %v392
        %v401 = vrsqrt.pop %v393
        %v402 = vrsqrt.pop %v394
        %v403 = vrsqrt.pop %v395
        %v404 = vld [vmem:[%s1] sm:$0xff]
        %s405 = scalar_lea.vmem %s1, 8
        %v406 = vld [vmem:[%s405] sm:$0xff]
        %v408 = vsel %vm219, %v211, 0
        %v411 = vsel %vm219, %v212, 0
        %v414 = vsel %vm219, %v213, 0
        %v417 = vsel %vm219, %v214, 0
        %v420 = vsel %vm219, %v215, 0
        %v423 = vsel %vm219, %v216, 0
        %v426 = vsel %vm219, %v217, 0
        %v429 = vsel %vm219, %v218, 0
        %431 = vmatprep.subr.mxu0 0.0
        %432 = vmatpush1.msra.mxu0 0.0
        %433 = vmatprep.subr.mxu0 0.0
        %434 = vmatpush1.msra.mxu0 0.0
        %435 = vmatprep.subr.mxu0 0.0
        %436 = vmatpush1.msra.mxu0 0.0
        %437 = vmatprep.subr.mxu0 0.0
        %438 = vmatpush1.msra.mxu0 0.0
        %439 = vmatprep.subr.mxu0 0.0
        %440 = vmatpush1.msra.mxu0 0.0
        %441 = vmatprep.subr.mxu0 0.0
        %442 = vmatpush1.msra.mxu0 0.0
        %443 = vmatprep.subr.mxu0 0.0
        %444 = vmatpush1.msra.mxu0 0.0
        %445 = vmatprep.subr.mxu0 0.0
        %446 = vmatpush1.msra.mxu0 0.0
        %447 = vmatprep.subr.mxu0 0.0
        %448 = vmatpush1.msra.mxu0 0.0
        %449 = vmatprep.subr.mxu0 0.0
        %450 = vmatpush1.msra.mxu0 0.0
        %451 = vmatprep.subr.mxu0 0.0
        %452 = vmatpush1.msra.mxu0 0.0
        %453 = vmatprep.subr.mxu0 0.0
        %454 = vmatpush1.msra.mxu0 0.0
        %455 = vmatprep.subr.mxu0 0.0
        %456 = vmatpush1.msra.mxu0 0.0
        %457 = vmatprep.subr.mxu0 0.0
        %458 = vmatpush1.msra.mxu0 0.0
        %459 = vmatprep.subr.mxu0 0.0
        %460 = vmatpush1.msra.mxu0 0.0
        %461 = vmatprep.subr.mxu0 0.0
        %462 = vmatpush1.msra.mxu0 %v406
        %463 = vmatprep.subr.mxu0 0.0
        %464 = vmatpush2.msra.mxu0 0.0
        %465 = vmatprep.subr.mxu0 0.0
        %466 = vmatpush2.msra.mxu0 0.0
        %467 = vmatprep.subr.mxu0 0.0
        %468 = vmatpush2.msra.mxu0 0.0
        %469 = vmatprep.subr.mxu0 0.0
        %470 = vmatpush2.msra.mxu0 0.0
        %471 = vmatprep.subr.mxu0 0.0
        %472 = vmatpush2.msra.mxu0 0.0
        %473 = vmatprep.subr.mxu0 0.0
        %474 = vmatpush2.msra.mxu0 0.0
        %475 = vmatprep.subr.mxu0 0.0
        %476 = vmatpush2.msra.mxu0 0.0
        %477 = vmatprep.subr.mxu0 0.0
        %478 = vmatpush2.msra.mxu0 0.0
        %479 = vmatprep.subr.mxu0 0.0
        %480 = vmatpush2.msra.mxu0 0.0
        %481 = vmatprep.subr.mxu0 0.0
        %482 = vmatpush2.msra.mxu0 0.0
        %483 = vmatprep.subr.mxu0 0.0
        %484 = vmatpush2.msra.mxu0 0.0
        %485 = vmatprep.subr.mxu0 0.0
        %486 = vmatpush2.msra.mxu0 0.0
        %487 = vmatprep.subr.mxu0 0.0
        %488 = vmatpush2.msra.mxu0 0.0
        %489 = vmatprep.subr.mxu0 0.0
        %490 = vmatpush2.msra.mxu0 0.0
        %491 = vmatprep.subr.mxu0 0.0
        %492 = vmatpush2.msra.mxu0 0.0
        %493 = vmatprep.subr.mxu0 0.0
        %494 = vmatpush2.msra.mxu0 0.0
        %495 = vmatprep.mubr.f32.mxu0 0.0
        %496 = vmatmul.mubr.f32.gmra.mxu0 %v408
        %v497 = vpop.f32.mrf.mxu0
        %v498 = vadd.f32 0.0, %v497
        %v499 = vpop.f32.mrf.mxu0
        %500 = vmatprep.mubr.f32.mxu0 0.0
        %501 = vmatmul.mubr.f32.gmra.mxu0 %v411
        %v502 = vpop.f32.mrf.mxu0
        %v503 = vadd.f32 0.0, %v502
        %v504 = vpop.f32.mrf.mxu0
        %505 = vmatprep.mubr.f32.mxu0 0.0
        %506 = vmatmul.mubr.f32.gmra.mxu0 %v414
        %v507 = vpop.f32.mrf.mxu0
        %v508 = vadd.f32 0.0, %v507
        %v509 = vpop.f32.mrf.mxu0
        %510 = vmatprep.mubr.f32.mxu0 0.0
        %511 = vmatmul.mubr.f32.gmra.mxu0 %v417
        %v512 = vpop.f32.mrf.mxu0
        %v513 = vadd.f32 0.0, %v512
        %v514 = vpop.f32.mrf.mxu0
        %515 = vmatprep.mubr.f32.mxu0 0.0
        %516 = vmatmul.mubr.f32.gmra.mxu0 %v420
        %v517 = vpop.f32.mrf.mxu0
        %v518 = vadd.f32 0.0, %v517
        %v519 = vpop.f32.mrf.mxu0
        %520 = vmatprep.mubr.f32.mxu0 0.0
        %521 = vmatmul.mubr.f32.gmra.mxu0 %v423
        %v522 = vpop.f32.mrf.mxu0
        %v523 = vadd.f32 0.0, %v522
        %v524 = vpop.f32.mrf.mxu0
        %525 = vmatprep.mubr.f32.mxu0 0.0
        %526 = vmatmul.mubr.f32.gmra.mxu0 %v426
        %v527 = vpop.f32.mrf.mxu0
        %v528 = vadd.f32 0.0, %v527
        %v529 = vpop.f32.mrf.mxu0
        %530 = vmatprep.mubr.f32.mxu0 0.0
        %531 = vmatmul.mubr.f32.gmra.mxu0 %v429
        %v532 = vpop.f32.mrf.mxu0
        %v533 = vadd.f32 0.0, %v532
        %v534 = vpop.f32.mrf.mxu0
        %535 = vdwg.mxu0
        %v537 = vsel %vm219, %v202, 0
        %v540 = vsel %vm219, %v203, 0
        %v543 = vsel %vm219, %v204, 0
        %v546 = vsel %vm219, %v205, 0
        %v549 = vsel %vm219, %v206, 0
        %v552 = vsel %vm219, %v207, 0
        %v555 = vsel %vm219, %v208, 0
        %v558 = vsel %vm219, %v209, 0
        %560 = vmatprep.subr.mxu0 0.0
        %561 = vmatpush1.msra.mxu0 0.0
        %562 = vmatprep.subr.mxu0 0.0
        %563 = vmatpush1.msra.mxu0 0.0
        %564 = vmatprep.subr.mxu0 0.0
        %565 = vmatpush1.msra.mxu0 0.0
        %566 = vmatprep.subr.mxu0 0.0
        %567 = vmatpush1.msra.mxu0 0.0
        %568 = vmatprep.subr.mxu0 0.0
        %569 = vmatpush1.msra.mxu0 0.0
        %570 = vmatprep.subr.mxu0 0.0
        %571 = vmatpush1.msra.mxu0 0.0
        %572 = vmatprep.subr.mxu0 0.0
        %573 = vmatpush1.msra.mxu0 0.0
        %574 = vmatprep.subr.mxu0 0.0
        %575 = vmatpush1.msra.mxu0 0.0
        %576 = vmatprep.subr.mxu0 0.0
        %577 = vmatpush1.msra.mxu0 0.0
        %578 = vmatprep.subr.mxu0 0.0
        %579 = vmatpush1.msra.mxu0 0.0
        %580 = vmatprep.subr.mxu0 0.0
        %581 = vmatpush1.msra.mxu0 0.0
        %582 = vmatprep.subr.mxu0 0.0
        %583 = vmatpush1.msra.mxu0 0.0
        %584 = vmatprep.subr.mxu0 0.0
        %585 = vmatpush1.msra.mxu0 0.0
        %586 = vmatprep.subr.mxu0 0.0
        %587 = vmatpush1.msra.mxu0 0.0
        %588 = vmatprep.subr.mxu0 0.0
        %589 = vmatpush1.msra.mxu0 0.0
        %590 = vmatprep.subr.mxu0 0.0
        %591 = vmatpush1.msra.mxu0 %v404
        %592 = vmatprep.subr.mxu0 0.0
        %593 = vmatpush2.msra.mxu0 0.0
        %594 = vmatprep.subr.mxu0 0.0
        %595 = vmatpush2.msra.mxu0 0.0
        %596 = vmatprep.subr.mxu0 0.0
        %597 = vmatpush2.msra.mxu0 0.0
        %598 = vmatprep.subr.mxu0 0.0
        %599 = vmatpush2.msra.mxu0 0.0
        %600 = vmatprep.subr.mxu0 0.0
        %601 = vmatpush2.msra.mxu0 0.0
        %602 = vmatprep.subr.mxu0 0.0
        %603 = vmatpush2.msra.mxu0 0.0
        %604 = vmatprep.subr.mxu0 0.0
        %605 = vmatpush2.msra.mxu0 0.0
        %606 = vmatprep.subr.mxu0 0.0
        %607 = vmatpush2.msra.mxu0 0.0
        %608 = vmatprep.subr.mxu0 0.0
        %609 = vmatpush2.msra.mxu0 0.0
        %610 = vmatprep.subr.mxu0 0.0
        %611 = vmatpush2.msra.mxu0 0.0
        %612 = vmatprep.subr.mxu0 0.0
        %613 = vmatpush2.msra.mxu0 0.0
        %614 = vmatprep.subr.mxu0 0.0
        %615 = vmatpush2.msra.mxu0 0.0
        %616 = vmatprep.subr.mxu0 0.0
        %617 = vmatpush2.msra.mxu0 0.0
        %618 = vmatprep.subr.mxu0 0.0
        %619 = vmatpush2.msra.mxu0 0.0
        %620 = vmatprep.subr.mxu0 0.0
        %621 = vmatpush2.msra.mxu0 0.0
        %622 = vmatprep.subr.mxu0 0.0
        %623 = vmatpush2.msra.mxu0 0.0
        %624 = vmatprep.mubr.f32.mxu0 0.0
        %625 = vmatmul.mubr.f32.gmra.mxu0 %v537
        %v626 = vpop.f32.mrf.mxu0
        %v627 = vadd.f32 %v498, %v626
        %v628 = vpop.f32.mrf.mxu0
        %629 = vmatprep.mubr.f32.mxu0 0.0
        %630 = vmatmul.mubr.f32.gmra.mxu0 %v540
        %v631 = vpop.f32.mrf.mxu0
        %v632 = vadd.f32 %v503, %v631
        %v633 = vpop.f32.mrf.mxu0
        %634 = vmatprep.mubr.f32.mxu0 0.0
        %635 = vmatmul.mubr.f32.gmra.mxu0 %v543
        %v636 = vpop.f32.mrf.mxu0
        %v637 = vadd.f32 %v508, %v636
        %v638 = vpop.f32.mrf.mxu0
        %639 = vmatprep.mubr.f32.mxu0 0.0
        %640 = vmatmul.mubr.f32.gmra.mxu0 %v546
        %v641 = vpop.f32.mrf.mxu0
        %v642 = vadd.f32 %v513, %v641
        %v643 = vpop.f32.mrf.mxu0
        %644 = vmatprep.mubr.f32.mxu0 0.0
        %645 = vmatmul.mubr.f32.gmra.mxu0 %v549
        %v646 = vpop.f32.mrf.mxu0
        %v647 = vadd.f32 %v518, %v646
        %v648 = vpop.f32.mrf.mxu0
        %649 = vmatprep.mubr.f32.mxu0 0.0
        %650 = vmatmul.mubr.f32.gmra.mxu0 %v552
        %v651 = vpop.f32.mrf.mxu0
        %v652 = vadd.f32 %v523, %v651
        %v653 = vpop.f32.mrf.mxu0
        %654 = vmatprep.mubr.f32.mxu0 0.0
        %655 = vmatmul.mubr.f32.gmra.mxu0 %v555
        %v656 = vpop.f32.mrf.mxu0
        %v657 = vadd.f32 %v528, %v656
        %v658 = vpop.f32.mrf.mxu0
        %659 = vmatprep.mubr.f32.mxu0 0.0
        %660 = vmatmul.mubr.f32.gmra.mxu0 %v558
        %v661 = vpop.f32.mrf.mxu0
        %v662 = vadd.f32 %v533, %v661
        %v663 = vpop.f32.mrf.mxu0
        %664 = vdwg.mxu0
        %v665 = vld [vmem:[%s2] sm:$0x1]
        %v667 = vlaneseq
        %v668 = vshrl.u32 %v667, 7
        %v669 = vsub.s32 0, %v668
        %v670 = vrot.slane %v665, %v669
        %v672 = vmul.f32 %v348, %v670
        %v673 = vmul.f32 %v349, %v670
        %v674 = vmul.f32 %v350, %v670
        %v675 = vmul.f32 %v351, %v670
        %v676 = vmul.f32 %v352, %v670
        %v677 = vmul.f32 %v353, %v670
        %v678 = vmul.f32 %v354, %v670
        %v679 = vmul.f32 %v355, %v670
        %v680 = vsub.f32 %v627, %v672
        %v681 = vsub.f32 %v632, %v673
        %v682 = vsub.f32 %v637, %v674
        %v683 = vsub.f32 %v642, %v675
        %v684 = vsub.f32 %v647, %v676
        %v685 = vsub.f32 %v652, %v677
        %v686 = vsub.f32 %v657, %v678
        %v687 = vsub.f32 %v662, %v679
        %v688 = vmul.f32 %v680, %v396
        %v689 = vmul.f32 %v681, %v397
        %v690 = vmul.f32 %v682, %v398
        %v691 = vmul.f32 %v683, %v399
        %v692 = vmul.f32 %v684, %v400
        %v693 = vmul.f32 %v685, %v401
        %v694 = vmul.f32 %v686, %v402
        %v695 = vmul.f32 %v687, %v403
        %v696 = vld [vmem:[%s3] sm:$0x1]
        %v698 = vlaneseq
        %v699 = vshrl.u32 %v698, 7
        %v700 = vsub.s32 0, %v699
        %v701 = vrot.slane %v696, %v700
        %v703 = vadd.f32 %v688, %v701
        %v704 = vadd.f32 %v689, %v701
        %v705 = vadd.f32 %v690, %v701
        %v706 = vadd.f32 %v691, %v701
        %v707 = vadd.f32 %v692, %v701
        %v708 = vadd.f32 %v693, %v701
        %v709 = vadd.f32 %v694, %v701
        %v710 = vadd.f32 %v695, %v701
        %711 = vst [vmem:[%s193] sm:$0xff] %v703
        %712 = vst [vmem:[%s193 + $0x8] sm:$0xff] %v704
        %713 = vst [vmem:[%s193 + $0x10] sm:$0xff] %v705
        %714 = vst [vmem:[%s193 + $0x18] sm:$0xff] %v706
        %715 = vst [vmem:[%s193 + $0x20] sm:$0xff] %v707
        %716 = vst [vmem:[%s193 + $0x28] sm:$0xff] %v708
        %717 = vst [vmem:[%s193 + $0x30] sm:$0xff] %v709
        %718 = vst [vmem:[%s193 + $0x38] sm:$0xff] %v710
        %s719 = sand.u32 %s115, 1
        %s720 = scalar_lea.sflag [#allocation3], %s719
        %s721 = sand.u32 %s115, 1
        %s722 = smul.addr %s721, 64
        %s723 = scalar_lea.vmem [#allocation2], %s722
        // Predicated region
        $region37: #{tpu_custom_call.1} parent=35 // pred_check
          %p724 = pneg %p125
        $region38: #{tpu_custom_call.1} parent=35 // pred_check_branch
          %726 = sbr.rel (%p724) target = $region40
        $region39: #{tpu_custom_call.1} parent=35 // pred_region
          %s727 = smul.u32 8, %s18
          %s729 = ssub.s32 1024, 1024
          %730 = vsyncadd %s720, %s729
          %s731 = smul.addr %s727, 128
          %s732 = scalar_lea.hbm %s4, %s731
          %s733 = sshll.u32 %s723, 4
          %s734 = int_to_ptr.vmem [resolvable:$true] %s733
          %739 = dma.vmem_to_hbm [thread:$0]  %s734, 1024, %s732, %s720, 128, 128, 8
        $region40: #{tpu_custom_call.1} parent=35 // pred_fallthru
          _
      $region36: #{tpu_custom_call.1} parent=5 // pred_fallthru
        _
      %p740 = scmp.le.s32.totalorder 2, %s13
      // Predicated region
      $region41: #{tpu_custom_call.1} parent=5 // pred_check
        %p741 = pneg %p740
      $region42: #{tpu_custom_call.1} parent=5 // pred_check_branch
        %743 = sbr.rel (%p741) target = $region44
      $region43: #{tpu_custom_call.1} parent=5 // pred_region
        %s744 = ssub.s32 %s13, 2
        // Predicated region
        $region45: #{tpu_custom_call.1} parent=43 // pred_check
          %p745 = pneg %p131
        $region46: #{tpu_custom_call.1} parent=43 // pred_check_branch
          %747 = sbr.rel (%p745) target = $region48
        $region47: #{tpu_custom_call.1} parent=43 // pred_region
          %s748 = sand.u32 %s116, 1
          %s749 = scalar_lea.sflag [#allocation3], %s748
          %s750 = sand.u32 %s116, 1
          %s751 = smul.addr %s750, 64
          %s752 = scalar_lea.vmem [#allocation2], %s751
          %753 = dma.done %s749, 1024
        $region48: #{tpu_custom_call.1} parent=43 // pred_fallthru
          _
      $region44: #{tpu_custom_call.1} parent=5 // pred_fallthru
        _
    $region6: #{tpu_custom_call.1} parent=1 // loop_footer
      %s17 = sadd.s32 1, %s13
    $region7: #{tpu_custom_call.1} parent=1 // loop_footer_branch
      %12 = sbr.rel target = $region3
    $region8: #{tpu_custom_call.1} parent=1 // loop_exit
      _
    %754 = vsyncpa [#allocation3], 1
    %s755 = scalar_lea.sflag [#allocation3], 1
    %756 = vsyncpa %s755, 1

</llo_original>
